<compile_context>
chip_gen: v6e
topology: v6e:2x2x1
jax: 0.10.0
libtpu: 0.0.40
codegen_flags: <defaults>
</compile_context>

<pallas_src>
import math
import numpy as np
import jax
import jax.numpy as jnp
from jax.experimental import pallas as pl
from jax.experimental.pallas import tpu as pltpu


def _round_up(x: int, m: int) -> int:
    return ((x + m - 1) // m) * m


# ----------------------------- Slicer (host-side) -----------------------------
class Slicer:
    def __init__(self, max_blocks: int, block_mask: np.ndarray) -> None:
        block_mask = np.asarray(block_mask).astype(bool)
        self.block_size = block_mask.shape[0]
        self.num_kept_tokens = int(block_mask.sum())
        kept_indices = np.tile(np.where(block_mask)[0], max_blocks)
        offsets = np.repeat(np.arange(max_blocks), self.num_kept_tokens)
        self.indices = kept_indices + self.block_size * offsets
        # cache of (num_steps, prev_steps) -> static index array
        self.cache = {}
        max_steps = max_blocks * self.block_size
        for num_steps in range(max_steps + 1):
            for prev_steps in range(max_steps + 1):
                total_steps = num_steps + prev_steps
                num_blocks = math.ceil(total_steps / self.block_size)
                idx = self.indices[: num_blocks * self.num_kept_tokens]
                sel = idx[np.logical_and(prev_steps <= idx, idx < total_steps)] - prev_steps
                self.cache[(num_steps, prev_steps)] = sel.astype(np.int32)

    def compute_slice(self, num_steps: int, prev_steps: int = 0) -> np.ndarray:
        return self.cache[(num_steps, prev_steps)]


# ----------------------------- Pallas head kernels -----------------------------
def _head_mlp_fused_kernel(x_ref, w1_ref, b1_ref, w2_ref, b2_ref, o_ref):
    # x: (tm, D) bf16   w1: (D, H) bf16   b1: (1, H) f32
    # w2: (H, O_pad) bf16   b2: (1, O_pad) f32   o: (tm, O_pad) f32
    h = jnp.dot(x_ref[...], w1_ref[...], preferred_element_type=jnp.float32)
    h = jnp.maximum(h + b1_ref[...], 0.0).astype(x_ref.dtype)   # bias + ReLU in f32
    o = jnp.dot(h, w2_ref[...], preferred_element_type=jnp.float32)
    o_ref[...] = (o + b2_ref[...]).astype(o_ref.dtype)


def _head_mlp_tiled_kernel(x_ref, w1_ref, b1_ref, w2_ref, b2_ref, o_ref, h_ref):
    # x:  (tm, D)  bf16     w1: (D, H)  bf16     b1: (1, H)   f32
    # w2: (H, tn)  bf16     b2: (1, tn) f32      o:  (tm, tn) f32
    # h_ref: VMEM scratch (tm, H) bf16 -- hidden activations, reused across O tiles.
    @pl.when(pl.program_id(1) == 0)
    def _():
        h = jnp.dot(x_ref[...], w1_ref[...], preferred_element_type=jnp.float32)
        h = jnp.maximum(h + b1_ref[...], 0.0)
        h_ref[...] = h.astype(h_ref.dtype)

    o = jnp.dot(h_ref[...], w2_ref[...], preferred_element_type=jnp.float32)
    o_ref[...] = (o + b2_ref[...]).astype(o_ref.dtype)


def head_mlp_pallas(x2d, w1, b1, w2, b2, *, tm: int = 256, tn: int = 512):
    """Apply Linear(D,H) -> ReLU -> Linear(H,O) to an (N, D) slab of tokens."""
    N, D = x2d.shape
    H = w1.shape[1]
    O = w2.shape[1]
    if N == 0:
        return jnp.zeros((0, O), jnp.float32)

    # Lane-dense output: pad O up to a multiple of 128 (zero columns), slice after.
    O_pad = _round_up(O, 128)
    if O_pad != O:
        w2 = jnp.pad(w2, ((0, 0), (0, O_pad - O)))
        b2 = jnp.pad(b2, (0, O_pad - O))

    # bf16 MXU operands, f32 accumulation / elementwise.  (In production, keep the
    # weights stored in bf16 so these casts disappear.)
    xb = x2d.astype(jnp.bfloat16)
    w1b = w1.astype(jnp.bfloat16)
    w2b = w2.astype(jnp.bfloat16)
    b1f = b1.astype(jnp.float32).reshape(1, H)
    b2f = b2.astype(jnp.float32).reshape(1, O_pad)

    # Tile sizes: rows must be a multiple of 8; O tile a multiple of 128.
    tm = min(_round_up(tm, 8), _round_up(N, 8))
    tn = min(_round_up(tn, 128), O_pad)
    n_row_tiles = pl.cdiv(N, tm)
    n_col_tiles = pl.cdiv(O_pad, tn)

    flops = 2 * N * (D * H + H * O_pad)
    bytes_accessed = 2 * (N * D + D * H + H * O_pad) + 4 * (H + O_pad + N * O_pad)
    cost = pl.CostEstimate(flops=flops, transcendentals=0, bytes_accessed=bytes_accessed)
    cparams_1d = pltpu.CompilerParams(
        dimension_semantics=("parallel",),
        vmem_limit_bytes=48 * 1024 * 1024,             # safe on v7x's 64 MiB/TC
    )
    cparams_2d = pltpu.CompilerParams(
        dimension_semantics=("parallel", "arbitrary"),
        vmem_limit_bytes=48 * 1024 * 1024,
    )

    if n_col_tiles == 1:
        # Whole padded O fits in one column slab: fused kernel, no h scratch.
        out = pl.pallas_call(
            _head_mlp_fused_kernel,
            out_shape=jax.ShapeDtypeStruct((N, O_pad), jnp.float32),
            grid=(n_row_tiles,),
            in_specs=[
                pl.BlockSpec((tm, D), lambda i: (i, 0)),       # activations: row tiles
                pl.BlockSpec((D, H), lambda i: (0, 0)),        # w1 resident
                pl.BlockSpec((1, H), lambda i: (0, 0)),        # b1 resident
                pl.BlockSpec((H, O_pad), lambda i: (0, 0)),    # w2 resident
                pl.BlockSpec((1, O_pad), lambda i: (0, 0)),    # b2 resident
            ],
            out_specs=pl.BlockSpec((tm, O_pad), lambda i: (i, 0)),
            compiler_params=cparams_1d,
            cost_estimate=cost,
        )(xb, w1b, b1f, w2b, b2f)
    else:
        # Large O: stream w2 in column slabs; cache h in VMEM across O tiles.
        out = pl.pallas_call(
            _head_mlp_tiled_kernel,
            out_shape=jax.ShapeDtypeStruct((N, O_pad), jnp.float32),
            grid=(n_row_tiles, n_col_tiles),
            in_specs=[
                pl.BlockSpec((tm, D), lambda i, j: (i, 0)),    # activations: row tiles
                pl.BlockSpec((D, H), lambda i, j: (0, 0)),     # w1 resident
                pl.BlockSpec((1, H), lambda i, j: (0, 0)),     # b1 resident
                pl.BlockSpec((H, tn), lambda i, j: (0, j)),    # w2 column slab per O tile
                pl.BlockSpec((1, tn), lambda i, j: (0, j)),    # b2 slab per O tile
            ],
            out_specs=pl.BlockSpec((tm, tn), lambda i, j: (i, j)),
            scratch_shapes=[pltpu.VMEM((tm, H), jnp.bfloat16)],
            compiler_params=cparams_2d,
            cost_estimate=cost,
        )(xb, w1b, b1f, w2b, b2f)

    if O_pad != O:
        out = out[:, :O]
    return out


# ----------------------------- Head module -----------------------------
class Head(Slicer):
    """Slicer + MLP head.  head_module = Linear(D,H) -> ReLU -> Linear(H,O)."""

    def __init__(self, max_blocks, block_mask, w1, b1, w2, b2):
        super().__init__(max_blocks, block_mask)
        self.w1, self.b1, self.w2, self.b2 = w1, b1, w2, b2

    def forward(self, x, num_steps: int, prev_steps, *, tm: int = 256, tn: int = 512):
        B, T, D = x.shape
        O = self.w2.shape[1]
        if isinstance(prev_steps, int):
            sl = self.compute_slice(num_steps, prev_steps)          # static indices
            K = int(sl.shape[0])
            if K == 0:
                return jnp.zeros((B, 0, O), jnp.float32)
            if K == T and np.array_equal(sl, np.arange(T)):
                x_sliced = x                                        # identity slice
            else:
                x_sliced = x[:, jnp.asarray(sl)]                    # (B, K, D) gather
            flat = x_sliced.reshape(B * K, D)
            out = head_mlp_pallas(flat, self.w1, self.b1, self.w2, self.b2, tm=tm, tn=tn)
            return out.reshape(B, K, out.shape[-1])
        else:
            # Per-batch prev_steps (sequence / array of host ints), concatenated along
            # dim 0, matching the torch.Tensor branch.  NOTE: shape varies with the
            # prev_steps values -> repeated recompilation across calls (perf hazard).
            steps = np.asarray(prev_steps).tolist()
            pieces = [x[i, jnp.asarray(self.compute_slice(num_steps, int(p)))]
                      for i, p in enumerate(steps)]
            flat = jnp.concatenate(pieces, axis=0) if pieces else jnp.zeros((0, D), x.dtype)
            return head_mlp_pallas(flat, self.w1, self.b1, self.w2, self.b2, tm=tm, tn=tn)


# ----------------------------- Demo -----------------------------
def _ref_mlp(x2d, w1, b1, w2, b2):
    """Pure-JAX reference mirroring the kernel numerics (bf16 operands, f32 accum)."""
    xb = x2d.astype(jnp.bfloat16)
    h = jnp.dot(xb, w1.astype(jnp.bfloat16), preferred_element_type=jnp.float32)
    h = jnp.maximum(h + b1, 0.0).astype(jnp.bfloat16)
    return jnp.dot(h, w2.astype(jnp.bfloat16), preferred_element_type=jnp.float32) + b2


if __name__ == "__main__":
    key = jax.random.PRNGKey(0)
    k_x, k_w1, k_b1, k_w2, k_b2, k_w2b, k_b2b = jax.random.split(key, 7)

    # small shapes (exercise O-padding, ragged row blocks and a multi-step grid)
    max_blocks = 4
    block_mask = np.array([1, 1, 1, 1, 0, 0, 1, 1], dtype=np.int32)   # block_size=8
    B, D, H, O = 3, 128, 128, 80
    T = max_blocks * block_mask.shape[0]                               # 32

    x = jax.random.normal(k_x, (B, T, D), dtype=jnp.float32)
    w1 = jax.random.normal(k_w1, (D, H), dtype=jnp.float32) * 0.1
    b1 = jax.random.normal(k_b1, (H,), dtype=jnp.float32) * 0.1
    w2 = jax.random.normal(k_w2, (H, O), dtype=jnp.float32) * 0.1
    b2 = jax.random.normal(k_b2, (O,), dtype=jnp.float32) * 0.1

    head = Head(max_blocks, block_mask, w1, b1, w2, b2)

    num_steps, prev_steps = T, 0
    sl = head.compute_slice(num_steps, prev_steps)
    K = sl.shape[0]                                                    # 24 -> N = 72

    # --- fused path (single O tile), tm=32 -> 3 row tiles with ragged last block ---
    out = head.forward(x, num_steps, prev_steps, tm=32)
    out = jax.block_until_ready(out)
    x_sl = x[:, jnp.asarray(sl)].reshape(B * K, D)
    ref = _ref_mlp(x_sl, w1, b1, w2, b2).reshape(B, K, O)
    np.testing.assert_allclose(np.asarray(out), np.asarray(ref), rtol=1e-2, atol=1e-3)

    # --- O-tiled path (w2 streamed in column slabs, h cached in VMEM scratch) ---
    O_big = 300
    w2b = jax.random.normal(k_w2b, (H, O_big), dtype=jnp.float32) * 0.1
    b2b = jax.random.normal(k_b2b, (O_big,), dtype=jnp.float32) * 0.1
    head_big = Head(max_blocks, block_mask, w1, b1, w2b, b2b)
    out_big = head_big.forward(x, num_steps, prev_steps, tm=32, tn=128)  # O_pad=384 -> 3 tiles
    out_big = jax.block_until_ready(out_big)
    ref_big = _ref_mlp(x_sl, w1, b1, w2b, b2b).reshape(B, K, O_big)
    np.testing.assert_allclose(np.asarray(out_big), np.asarray(ref_big), rtol=1e-2, atol=1e-3)

    print("KERNEL_OK")
</pallas_src>

<mosaic_0001>
module attributes {stable_mosaic.version = 11 : i64} {
  func.func @_head_mlp_fused_kernel(%arg0: i32, %arg1: memref<32x128xbf16, #tpu.memory_space<vmem>>, %arg2: memref<128x128xbf16, #tpu.memory_space<vmem>>, %arg3: memref<1x128xf32, #tpu.memory_space<vmem>>, %arg4: memref<128x128xbf16, #tpu.memory_space<vmem>>, %arg5: memref<1x128xf32, #tpu.memory_space<vmem>>, %arg6: memref<32x128xf32, #tpu.memory_space<vmem>>) attributes {dimension_semantics = [#tpu.dimension_semantics<parallel>], iteration_bounds = array<i64: 3>, scalar_prefetch = 0 : i64, scratch_operands = 0 : i64, tpu.core_type = #tpu.core_type<tc>, window_params = [{transform_indices = @transform_0, window_bounds = array<i64: 32, 128>}, {pipeline_mode = #tpu.pipeline_mode<synchronous>, transform_indices = @transform_1, window_bounds = array<i64: 128, 128>}, {pipeline_mode = #tpu.pipeline_mode<synchronous>, transform_indices = @transform_2, window_bounds = array<i64: 1, 128>}, {pipeline_mode = #tpu.pipeline_mode<synchronous>, transform_indices = @transform_3, window_bounds = array<i64: 128, 128>}, {pipeline_mode = #tpu.pipeline_mode<synchronous>, transform_indices = @transform_4, window_bounds = array<i64: 1, 128>}, {transform_indices = @transform_5, window_bounds = array<i64: 32, 128>}]} {
    %c0 = arith.constant 0 : index
    %c0_0 = arith.constant 0 : index
    %0 = vector.load %arg1[%c0, %c0_0] : memref<32x128xbf16, #tpu.memory_space<vmem>>, vector<32x128xbf16>
    %c0_1 = arith.constant 0 : index
    %c0_2 = arith.constant 0 : index
    %1 = vector.load %arg2[%c0_1, %c0_2] : memref<128x128xbf16, #tpu.memory_space<vmem>>, vector<128x128xbf16>
    %cst = arith.constant dense<0.000000e+00> : vector<32x128xf32>
    %2 = tpu.matmul %0, %1, %cst {dimension_numbers = #tpu.dot_dimension_numbers<[1], [0], [0], [1], [0, 0, 1, 1], [], []>} : vector<32x128xbf16>, vector<128x128xbf16>, vector<32x128xf32> -> vector<32x128xf32>
    %c0_3 = arith.constant 0 : index
    %c0_4 = arith.constant 0 : index
    %3 = vector.load %arg3[%c0_3, %c0_4] : memref<1x128xf32, #tpu.memory_space<vmem>>, vector<1x128xf32>
    %4 = vector.broadcast %3 : vector<1x128xf32> to vector<32x128xf32>
    %5 = arith.addf %2, %4 : vector<32x128xf32>
    %cst_5 = arith.constant 0.000000e+00 : f32
    %6 = vector.broadcast %cst_5 : f32 to vector<32x128xf32>
    %7 = arith.maximumf %5, %6 : vector<32x128xf32>
    %8 = arith.truncf %7 : vector<32x128xf32> to vector<32x128xbf16>
    %c0_6 = arith.constant 0 : index
    %c0_7 = arith.constant 0 : index
    %9 = vector.load %arg4[%c0_6, %c0_7] : memref<128x128xbf16, #tpu.memory_space<vmem>>, vector<128x128xbf16>
    %cst_8 = arith.constant dense<0.000000e+00> : vector<32x128xf32>
    %10 = tpu.matmul %8, %9, %cst_8 {dimension_numbers = #tpu.dot_dimension_numbers<[1], [0], [0], [1], [0, 0, 1, 1], [], []>} : vector<32x128xbf16>, vector<128x128xbf16>, vector<32x128xf32> -> vector<32x128xf32>
    %c0_9 = arith.constant 0 : index
    %c0_10 = arith.constant 0 : index
    %11 = vector.load %arg5[%c0_9, %c0_10] : memref<1x128xf32, #tpu.memory_space<vmem>>, vector<1x128xf32>
    %12 = vector.broadcast %11 : vector<1x128xf32> to vector<32x128xf32>
    %13 = arith.addf %10, %12 : vector<32x128xf32>
    %c0_11 = arith.constant 0 : index
    %c0_12 = arith.constant 0 : index
    %14 = vector.load %arg6[%c0_11, %c0_12] : memref<32x128xf32, #tpu.memory_space<vmem>>, vector<32x128xf32>
    tpu.vector_store %arg6[%c0_11, %c0_12], %13 {strides = array<i32>} : memref<32x128xf32, #tpu.memory_space<vmem>>, vector<32x128xf32>,
    return
  }
  func.func @transform_0(%arg0: i32) -> (i32, i32) {
    %c0_i32 = arith.constant 0 : i32
    %c0_i32_0 = arith.constant 0 : i32
    return %arg0, %c0_i32 : i32, i32
  }
  func.func @transform_1(%arg0: i32) -> (i32, i32) {
    %c0_i32 = arith.constant 0 : i32
    %c0_i32_0 = arith.constant 0 : i32
    %c0_i32_1 = arith.constant 0 : i32
    return %c0_i32, %c0_i32_0 : i32, i32
  }
  func.func @transform_2(%arg0: i32) -> (i32, i32) {
    %c0_i32 = arith.constant 0 : i32
    %c0_i32_0 = arith.constant 0 : i32
    %c0_i32_1 = arith.constant 0 : i32
    return %c0_i32, %c0_i32_0 : i32, i32
  }
  func.func @transform_3(%arg0: i32) -> (i32, i32) {
    %c0_i32 = arith.constant 0 : i32
    %c0_i32_0 = arith.constant 0 : i32
    %c0_i32_1 = arith.constant 0 : i32
    return %c0_i32, %c0_i32_0 : i32, i32
  }
  func.func @transform_4(%arg0: i32) -> (i32, i32) {
    %c0_i32 = arith.constant 0 : i32
    %c0_i32_0 = arith.constant 0 : i32
    %c0_i32_1 = arith.constant 0 : i32
    return %c0_i32, %c0_i32_0 : i32, i32
  }
  func.func @transform_5(%arg0: i32) -> (i32, i32) {
    %c0_i32 = arith.constant 0 : i32
    %c0_i32_0 = arith.constant 0 : i32
    return %arg0, %c0_i32 : i32, i32
  }
}

</mosaic_0001>

<llo_original>
// kernel: tpu_custom_call.1
$region0: #{tpu_custom_call.1}
  #allocation0 [shape = 'u32[]', space=smem, size = 0x4, offset = 0x4, fixed_abs, tag = 'smem constant byte address 0x4 - core index']
  #allocation1 [shape = 'u32[144,128]{1,0:T(1,128)}', space=vmem, size = 0x12000, scoped, tag = 'internal scratch']
  %s0 = inlined_call_operand.hbm [shape: bf16[72,128], index: 0, kind: input, shape index: {}]
  %s1 = inlined_call_operand.hbm [shape: bf16[128,128], index: 1, kind: input, shape index: {}]
  %s2 = inlined_call_operand.vmem [shape: f32[1,128], index: 2, kind: input, shape index: {}]
  %s3 = inlined_call_operand.hbm [shape: bf16[128,128], index: 3, kind: input, shape index: {}]
  %s4 = inlined_call_operand.vmem [shape: f32[1,128], index: 4, kind: input, shape index: {}]
  %s5 = inlined_call_operand.hbm [shape: f32[72,128], index: 5, kind: output, shape index: {}]
  %s6 = sld [smem:[#allocation0]]
  $region65: #{tpu_custom_call.1} parent=0
    _
  %s8 = ssub.s32 1, %s6
  %s9 = scalar_select 0, %s8, %s6
  $region1: #{tpu_custom_call.1} parent=0
    #allocation2 [shape = 'u8[16384]{0}', space=vmem, size = 0x4000, scoped, tag = 'input window, operand 0']
    #allocation3 [shape = 's32[2]{0}', space=sflag, size = 0x8, scoped, tag = 'scoped memory for tpu_custom_call.1']
    #allocation4 [shape = 's32[2]{0}', space=sflag, size = 0x8, scoped, tag = 'scoped memory for tpu_custom_call.1']
    #allocation5 [shape = 'u8[32768]{0}', space=vmem, size = 0x8000, scoped, tag = 'input window, operand 1, single buffered']
    #allocation6 [shape = 's32[1]{0}', space=sflag, size = 0x4, scoped, tag = 'scoped memory for tpu_custom_call.1']
    #allocation7 [shape = 'u8[32768]{0}', space=vmem, size = 0x8000, scoped, tag = 'input window, operand 3, single buffered']
    #allocation8 [shape = 'u8[32768]{0}', space=vmem, size = 0x8000, scoped, tag = 'output window, operand 0']
    %10 = vsyncpa [#allocation3], 0
    %s11 = scalar_lea.sflag [#allocation3], 1
    %12 = vsyncpa %s11, 0
    %13 = vsyncpa [#allocation6], 0
    %14 = vsyncpa [#allocation4], 0
    %s15 = scalar_lea.sflag [#allocation4], 1
    %16 = vsyncpa %s15, 0
    loop: start=0, step=1, limit=5
    $region2: #{tpu_custom_call.1} parent=1 // loop_pre_header
      _
    $region3: #{tpu_custom_call.1} parent=1 // loop_header
      %s18 = sphi 0, %s22
      %p19 = scmp.ge.s32.totalorder %s18, 5
      %s28 = sphi 0, %s30
      %s31 = sphi 0, %s28
      %s32 = sphi 0, %s31
      %s48 = sphi 0, %s32
      %s52 = sphi 0, %s52
      %s54 = sphi 0, %s52
      %s55 = sphi 0, %s54
      %s69 = sphi 0, %s55
      %s73 = sphi 0, %s73
      %s75 = sphi 0, %s73
      %s76 = sphi 0, %s75
      %s90 = sphi 0, %s76
      %s94 = sphi 0, %s94
      %s96 = sphi 0, %s94
      %s97 = sphi 0, %s96
      %s111 = sphi 0, %s97
      %s115 = sphi 0, %s115
      %s117 = sphi 0, %s115
      %s118 = sphi 0, %s117
      %s132 = sphi 0, %s118
      %s138 = sphi 0, %s140
      %s141 = sphi 0, %s138
      %s142 = sphi 0, %s141
      %s158 = sphi 0, %s142
    $region4: #{tpu_custom_call.1} parent=1 // loop_header_branch
      %21 = sbr.rel (%p19) target = $region8
    $region5: #{tpu_custom_call.1} parent=1 // loop_body
      %s23 = ssub.s32 %s18, 1
      %s24 = ssub.s32 %s18, 2
      %s25 = sadd.s32 %s18, 1
      %s26 = ssub.s32 %s18, %s25
      %p27 = scmp.eq.s32.totalorder %s26, 0
      %s29 = sadd.s32 %s28, 1
      %s30 = scalar_select %p27, %s28, %s29
      %p33 = pneg %p27
      %p34 = scmp.eq.s32.totalorder %s18, 2
      %p35 = por %p33, %p34
      %p36 = scmp.ne.s32.totalorder %s28, %s31
      %p37 = scmp.eq.s32.totalorder %s18, 0
      %p38 = por %p36, %p37
      %p39 = scmp.ne.s32.totalorder %s28, %s31
      %p40 = scmp.eq.s32.totalorder %s23, 2
      %p41 = por %p39, %p40
      %p42 = scmp.ne.s32.totalorder %s31, %s32
      %p43 = scmp.eq.s32.totalorder %s23, 0
      %p44 = por %p42, %p43
      %p45 = scmp.ne.s32.totalorder %s31, %s32
      %p46 = scmp.eq.s32.totalorder %s24, 2
      %p47 = por %p45, %p46
      %p49 = scmp.ne.s32.totalorder %s32, %s48
      %p50 = scmp.eq.s32.totalorder %s24, 0
      %p51 = por %p49, %p50
      %s53 = sadd.s32 %s52, 1
      %p56 = scmp.eq.s32.totalorder %s18, 2
      %p57 = scmp.ne.s32.totalorder %s52, %s54
      %p58 = scmp.eq.s32.totalorder %s18, 0
      %p59 = por %p57, %p58
      %p60 = scmp.ne.s32.totalorder %s52, %s54
      %p61 = scmp.eq.s32.totalorder %s23, 2
      %p62 = por %p60, %p61
      %p63 = scmp.ne.s32.totalorder %s54, %s55
      %p64 = scmp.eq.s32.totalorder %s23, 0
      %p65 = por %p63, %p64
      %p66 = scmp.ne.s32.totalorder %s54, %s55
      %p67 = scmp.eq.s32.totalorder %s24, 2
      %p68 = por %p66, %p67
      %p70 = scmp.ne.s32.totalorder %s55, %s69
      %p71 = scmp.eq.s32.totalorder %s24, 0
      %p72 = por %p70, %p71
      %s74 = sadd.s32 %s73, 1
      %p77 = scmp.eq.s32.totalorder %s18, 2
      %p78 = scmp.ne.s32.totalorder %s73, %s75
      %p79 = scmp.eq.s32.totalorder %s18, 0
      %p80 = por %p78, %p79
      %p81 = scmp.ne.s32.totalorder %s73, %s75
      %p82 = scmp.eq.s32.totalorder %s23, 2
      %p83 = por %p81, %p82
      %p84 = scmp.ne.s32.totalorder %s75, %s76
      %p85 = scmp.eq.s32.totalorder %s23, 0
      %p86 = por %p84, %p85
      %p87 = scmp.ne.s32.totalorder %s75, %s76
      %p88 = scmp.eq.s32.totalorder %s24, 2
      %p89 = por %p87, %p88
      %p91 = scmp.ne.s32.totalorder %s76, %s90
      %p92 = scmp.eq.s32.totalorder %s24, 0
      %p93 = por %p91, %p92
      %s95 = sadd.s32 %s94, 1
      %p98 = scmp.eq.s32.totalorder %s18, 2
      %p99 = scmp.ne.s32.totalorder %s94, %s96
      %p100 = scmp.eq.s32.totalorder %s18, 0
      %p101 = por %p99, %p100
      %p102 = scmp.ne.s32.totalorder %s94, %s96
      %p103 = scmp.eq.s32.totalorder %s23, 2
      %p104 = por %p102, %p103
      %p105 = scmp.ne.s32.totalorder %s96, %s97
      %p106 = scmp.eq.s32.totalorder %s23, 0
      %p107 = por %p105, %p106
      %p108 = scmp.ne.s32.totalorder %s96, %s97
      %p109 = scmp.eq.s32.totalorder %s24, 2
      %p110 = por %p108, %p109
      %p112 = scmp.ne.s32.totalorder %s97, %s111
      %p113 = scmp.eq.s32.totalorder %s24, 0
      %p114 = por %p112, %p113
      %s116 = sadd.s32 %s115, 1
      %p119 = scmp.eq.s32.totalorder %s18, 2
      %p120 = scmp.ne.s32.totalorder %s115, %s117
      %p121 = scmp.eq.s32.totalorder %s18, 0
      %p122 = por %p120, %p121
      %p123 = scmp.ne.s32.totalorder %s115, %s117
      %p124 = scmp.eq.s32.totalorder %s23, 2
      %p125 = por %p123, %p124
      %p126 = scmp.ne.s32.totalorder %s117, %s118
      %p127 = scmp.eq.s32.totalorder %s23, 0
      %p128 = por %p126, %p127
      %p129 = scmp.ne.s32.totalorder %s117, %s118
      %p130 = scmp.eq.s32.totalorder %s24, 2
      %p131 = por %p129, %p130
      %p133 = scmp.ne.s32.totalorder %s118, %s132
      %p134 = scmp.eq.s32.totalorder %s24, 0
      %p135 = por %p133, %p134
      %s136 = ssub.s32 %s18, %s25
      %p137 = scmp.eq.s32.totalorder %s136, 0
      %s139 = sadd.s32 %s138, 1
      %s140 = scalar_select %p137, %s138, %s139
      %p143 = pneg %p137
      %p144 = scmp.eq.s32.totalorder %s18, 2
      %p145 = por %p143, %p144
      %p146 = scmp.ne.s32.totalorder %s138, %s141
      %p147 = scmp.eq.s32.totalorder %s18, 0
      %p148 = por %p146, %p147
      %p149 = scmp.ne.s32.totalorder %s138, %s141
      %p150 = scmp.eq.s32.totalorder %s23, 2
      %p151 = por %p149, %p150
      %p152 = scmp.ne.s32.totalorder %s141, %s142
      %p153 = scmp.eq.s32.totalorder %s23, 0
      %p154 = por %p152, %p153
      %p155 = scmp.ne.s32.totalorder %s141, %s142
      %p156 = scmp.eq.s32.totalorder %s24, 2
      %p157 = por %p155, %p156
      %p159 = scmp.ne.s32.totalorder %s142, %s158
      %p160 = scmp.eq.s32.totalorder %s24, 0
      %p161 = por %p159, %p160
      %p162 = scmp.le.s32.totalorder 1, %s18
      %p163 = scmp.lt.s32.totalorder %s18, 4
      %p164 = pnand %p162, %p163
      %p165 = pneg %p164
      // Predicated region
      $region9: #{tpu_custom_call.1} parent=5 // pred_check
        _
      $region10: #{tpu_custom_call.1} parent=5 // pred_check_branch
        %167 = sbr.rel (%p164) target = $region12
      $region11: #{tpu_custom_call.1} parent=5 // pred_region
        %s168 = ssub.s32 %s18, 1
        // Predicated region
        $region13: #{tpu_custom_call.1} parent=11 // pred_check
          %p169 = pneg %p65
        $region14: #{tpu_custom_call.1} parent=11 // pred_check_branch
          %171 = sbr.rel (%p169) target = $region16
        $region15: #{tpu_custom_call.1} parent=11 // pred_region
          %s173 = ssub.s32 1024, 1024
          %174 = vsyncadd [#allocation6], %s173
          %s175 = sshll.u32 [#allocation5], 4
          %s176 = int_to_ptr.vmem [resolvable:$true] %s175
          %181 = dma.hbm_to_vmem [thread:$0]  %s1, 1024, %s176, [#allocation6], 64, 64, 4
        $region16: #{tpu_custom_call.1} parent=11 // pred_fallthru
          _
        // Predicated region
        $region17: #{tpu_custom_call.1} parent=11 // pred_check
          %p182 = pneg %p86
        $region18: #{tpu_custom_call.1} parent=11 // pred_check_branch
          %184 = sbr.rel (%p182) target = $region20
        $region19: #{tpu_custom_call.1} parent=11 // pred_region
          _
        $region20: #{tpu_custom_call.1} parent=11 // pred_fallthru
          _
        // Predicated region
        $region21: #{tpu_custom_call.1} parent=11 // pred_check
          %p185 = pneg %p107
        $region22: #{tpu_custom_call.1} parent=11 // pred_check_branch
          %187 = sbr.rel (%p185) target = $region24
        $region23: #{tpu_custom_call.1} parent=11 // pred_region
          %s189 = ssub.s32 1024, 1024
          %190 = vsyncadd [#allocation6], %s189
          %s191 = sshll.u32 [#allocation7], 4
          %s192 = int_to_ptr.vmem [resolvable:$true] %s191
          %197 = dma.hbm_to_vmem [thread:$0]  %s3, 1024, %s192, [#allocation6], 64, 64, 4
        $region24: #{tpu_custom_call.1} parent=11 // pred_fallthru
          _
        // Predicated region
        $region25: #{tpu_custom_call.1} parent=11 // pred_check
          %p198 = pneg %p128
        $region26: #{tpu_custom_call.1} parent=11 // pred_check_branch
          %200 = sbr.rel (%p198) target = $region28
        $region27: #{tpu_custom_call.1} parent=11 // pred_region
          _
        $region28: #{tpu_custom_call.1} parent=11 // pred_fallthru
          _
      $region12: #{tpu_custom_call.1} parent=5 // pred_fallthru
        _
      %p201 = scmp.lt.s32.totalorder %s18, 3
      // Predicated region
      $region29: #{tpu_custom_call.1} parent=5 // pred_check
        %p202 = pneg %p201
      $region30: #{tpu_custom_call.1} parent=5 // pred_check_branch
        %204 = sbr.rel (%p202) target = $region32
      $region31: #{tpu_custom_call.1} parent=5 // pred_region
        // Predicated region
        $region33: #{tpu_custom_call.1} parent=31 // pred_check
          %p205 = pneg %p38
        $region34: #{tpu_custom_call.1} parent=31 // pred_check_branch
          %207 = sbr.rel (%p205) target = $region36
        $region35: #{tpu_custom_call.1} parent=31 // pred_region
          %s208 = sand.u32 %s28, 1
          %s209 = scalar_lea.sflag [#allocation3], %s208
          %s210 = sand.u32 %s28, 1
          %s211 = smul.addr %s210, 16
          %s212 = scalar_lea.vmem [#allocation2], %s211
          %s213 = smul.u32 4, %s18
          %s214 = ssub.s32 9, %s213
          %p215 = scmp.lt.s32.totalorder %s214, 4
          %s216 = scalar_select %p215, %s214, 4
          %s217 = smul.u32 64, %s216
          %s219 = ssub.s32 256, %s217
          %220 = vsyncadd %s209, %s219
          %p221 = scmp.ne.s32.totalorder 0, %s217
          %s222 = smul.addr %s213, 64
          %s223 = scalar_lea.hbm %s0, %s222
          %s224 = smul.u32 4, %s216
          %s225 = sshll.u32 %s212, 4
          %s226 = int_to_ptr.vmem [resolvable:$true] %s225
          %s227 = sshll.u32 %s224, 4
          %231 = dma.hbm_to_vmem [thread:$0]  (%p221), %s223, %s227, %s226, %s209, 64, 64, 4
        $region36: #{tpu_custom_call.1} parent=31 // pred_fallthru
          _
      $region32: #{tpu_custom_call.1} parent=5 // pred_fallthru
        _
      %p232 = scmp.le.s32.totalorder 1, %s18
      %p233 = scmp.lt.s32.totalorder %s18, 4
      %p234 = pnand %p232, %p233
      %p235 = pneg %p234
      // Predicated region
      $region37: #{tpu_custom_call.1} parent=5 // pred_check
        _
      $region38: #{tpu_custom_call.1} parent=5 // pred_check_branch
        %237 = sbr.rel (%p234) target = $region40
      $region39: #{tpu_custom_call.1} parent=5 // pred_region
        %s238 = ssub.s32 %s18, 1
        %s239 = sand.u32 %s31, 1
        %s240 = scalar_lea.sflag [#allocation3], %s239
        %s241 = sand.u32 %s31, 1
        %s242 = smul.addr %s241, 16
        %s243 = scalar_lea.vmem [#allocation2], %s242
        // Predicated region
        $region41: #{tpu_custom_call.1} parent=39 // pred_check
          %p244 = pneg %p44
        $region42: #{tpu_custom_call.1} parent=39 // pred_check_branch
          %246 = sbr.rel (%p244) target = $region44
        $region43: #{tpu_custom_call.1} parent=39 // pred_region
          %247 = dma.done %s240, 256
        $region44: #{tpu_custom_call.1} parent=39 // pred_fallthru
          _
        // Predicated region
        $region45: #{tpu_custom_call.1} parent=39 // pred_check
          %p248 = pneg %p65
        $region46: #{tpu_custom_call.1} parent=39 // pred_check_branch
          %250 = sbr.rel (%p248) target = $region48
        $region47: #{tpu_custom_call.1} parent=39 // pred_region
          %251 = dma.done [#allocation6], 1024
        $region48: #{tpu_custom_call.1} parent=39 // pred_fallthru
          _
        // Predicated region
        $region49: #{tpu_custom_call.1} parent=39 // pred_check
          %p252 = pneg %p107
        $region50: #{tpu_custom_call.1} parent=39 // pred_check_branch
          %254 = sbr.rel (%p252) target = $region52
        $region51: #{tpu_custom_call.1} parent=39 // pred_region
          %255 = dma.done [#allocation6], 1024
        $region52: #{tpu_custom_call.1} parent=39 // pred_fallthru
          _
        %s256 = sand.u32 %s31, 1
        %s257 = scalar_lea.sflag [#allocation3], %s256
        %s258 = sand.u32 %s31, 1
        %s259 = smul.addr %s258, 16
        %s260 = scalar_lea.vmem [#allocation2], %s259
        %p261 = pneg %p44
        %p262 = pneg %p41
        %p263 = pneg %p65
        %p264 = pneg %p62
        %p265 = pneg %p86
        %p266 = pneg %p83
        %p267 = pneg %p107
        %p268 = pneg %p104
        %p269 = pneg %p128
        %p270 = pneg %p125
        %p271 = pneg %p154
        %p272 = pneg %p151
        %s273 = sand.u32 %s141, 1
        %s274 = scalar_lea.sflag [#allocation4], %s273
        %s275 = sand.u32 %s141, 1
        %s276 = smul.addr %s275, 32
        %s277 = scalar_lea.vmem [#allocation8], %s276
        %s278 = smul.u32 4, %s23
        %s279 = ssub.s32 9, %s278
        %p280 = scmp.lt.s32.totalorder %s279, 4
        %s281 = scalar_select %p280, %s279, 4
        %s282 = smul.u32 64, %s281
        %s283 = smul.u32 4, %s23
        %s284 = ssub.s32 9, %s283
        %p285 = scmp.lt.s32.totalorder %s284, 4
        %s286 = scalar_select %p285, %s284, 4
        %s287 = smul.u32 128, %s286
        %v289 = vld [vmem:[%s243] sm:$0xf]
        %v290 = vld [vmem:[%s243 + $0x4] sm:$0xf]
        %v291 = vld [vmem:[%s243 + $0x8] sm:$0xf]
        %v292 = vld [vmem:[%s243 + $0xc] sm:$0xf]
        %v293 = vld [vmem:[#allocation5] sm:$0xf]
        %v294 = vld [vmem:[#allocation5 + $0x4] sm:$0xf]
        %v295 = vld [vmem:[#allocation5 + $0x8] sm:$0xf]
        %v296 = vld [vmem:[#allocation5 + $0xc] sm:$0xf]
        %v297 = vld [vmem:[#allocation5 + $0x10] sm:$0xf]
        %v298 = vld [vmem:[#allocation5 + $0x14] sm:$0xf]
        %v299 = vld [vmem:[#allocation5 + $0x18] sm:$0xf]
        %v300 = vld [vmem:[#allocation5 + $0x1c] sm:$0xf]
        %v301 = vld [vmem:[#allocation5 + $0x20] sm:$0xf]
        %v302 = vld [vmem:[#allocation5 + $0x24] sm:$0xf]
        %v303 = vld [vmem:[#allocation5 + $0x28] sm:$0xf]
        %v304 = vld [vmem:[#allocation5 + $0x2c] sm:$0xf]
        %v305 = vld [vmem:[#allocation5 + $0x30] sm:$0xf]
        %v306 = vld [vmem:[#allocation5 + $0x34] sm:$0xf]
        %v307 = vld [vmem:[#allocation5 + $0x38] sm:$0xf]
        %v308 = vld [vmem:[#allocation5 + $0x3c] sm:$0xf]
        %v309 = vld [vmem:[%s2] sm:$0x1]
        %v311 = vlaneseq
        %v312 = vshrl.u32 %v311, 7
        %v313 = vsub.s32 0, %v312
        %v314 = vrot.slane %v309, %v313
        %v320 = vunpack.c.l.b16 %v289
        %v321 = vunpack.c.l.b16 %v290
        %v322 = vunpack.c.l.b16 %v291
        %v323 = vunpack.c.l.b16 %v292
        %v324 = vpack.c.b16 %v321, %v320
        %v325 = vpack.c.b16 %v323, %v322
        %v344 = vunpack.c.l.b16 %v293
        %v345 = vunpack.c.l.b16 %v294
        %v346 = vunpack.c.l.b16 %v295
        %v347 = vunpack.c.l.b16 %v296
        %v348 = vunpack.c.l.b16 %v297
        %v349 = vunpack.c.l.b16 %v298
        %v350 = vunpack.c.l.b16 %v299
        %v351 = vunpack.c.l.b16 %v300
        %v352 = vunpack.c.l.b16 %v301
        %v353 = vunpack.c.l.b16 %v302
        %v354 = vunpack.c.l.b16 %v303
        %v355 = vunpack.c.l.b16 %v304
        %v356 = vunpack.c.l.b16 %v305
        %v357 = vunpack.c.l.b16 %v306
        %v358 = vunpack.c.l.b16 %v307
        %v359 = vunpack.c.l.b16 %v308
        %v360 = vpack.c.b16 %v345, %v344
        %v361 = vpack.c.b16 %v347, %v346
        %v362 = vpack.c.b16 %v349, %v348
        %v363 = vpack.c.b16 %v351, %v350
        %v364 = vpack.c.b16 %v353, %v352
        %v365 = vpack.c.b16 %v355, %v354
        %v366 = vpack.c.b16 %v357, %v356
        %v367 = vpack.c.b16 %v359, %v358
        %376 = vmatprep.subr.bf16.mxu0 0
        %377 = vmatpush1.bf16.msra.mxu0 %v367
        %378 = vmatprep.subr.bf16.mxu0 0
        %379 = vmatpush1.bf16.msra.mxu0 %v366
        %380 = vmatprep.subr.bf16.mxu0 0
        %381 = vmatpush1.bf16.msra.mxu0 %v365
        %382 = vmatprep.subr.bf16.mxu0 0
        %383 = vmatpush1.bf16.msra.mxu0 %v364
        %384 = vmatprep.subr.bf16.mxu0 0
        %385 = vmatpush1.bf16.msra.mxu0 %v363
        %386 = vmatprep.subr.bf16.mxu0 0
        %387 = vmatpush1.bf16.msra.mxu0 %v362
        %388 = vmatprep.subr.bf16.mxu0 0
        %389 = vmatpush1.bf16.msra.mxu0 %v361
        %390 = vmatprep.subr.bf16.mxu0 0
        %391 = vmatpush1.bf16.msra.mxu0 %v360
        %392 = vmatprep.subr.bf16.mxu0 0
        %393 = vmatpush2.bf16.msra.mxu0 0
        %394 = vmatprep.subr.bf16.mxu0 0
        %395 = vmatpush2.bf16.msra.mxu0 0
        %396 = vmatprep.subr.bf16.mxu0 0
        %397 = vmatpush2.bf16.msra.mxu0 0
        %398 = vmatprep.subr.bf16.mxu0 0
        %399 = vmatpush2.bf16.msra.mxu0 0
        %400 = vmatprep.subr.bf16.mxu0 0
        %401 = vmatpush2.bf16.msra.mxu0 0
        %402 = vmatprep.subr.bf16.mxu0 0
        %403 = vmatpush2.bf16.msra.mxu0 0
        %404 = vmatprep.subr.bf16.mxu0 0
        %405 = vmatpush2.bf16.msra.mxu0 0
        %406 = vmatprep.subr.bf16.mxu0 0
        %407 = vmatpush2.bf16.msra.mxu0 0
        %408 = vmatprep.mubr.bf16.mxu0 0
        %409 = vmatmul.mubr.bf16.gmra.mxu0 %v324
        %v410 = vpop.f32.mrf.mxu0
        %v411 = vadd.f32 %v314, %v410
        %v412 = vpop.f32.mrf.mxu0
        %v413 = vpop.f32.mrf.mxu0
        %v414 = vadd.f32 %v314, %v413
        %v415 = vpop.f32.mrf.mxu0
        %416 = vmatprep.mubr.bf16.mxu0 0
        %417 = vmatmul.mubr.bf16.gmra.mxu0 %v325
        %v418 = vpop.f32.mrf.mxu0
        %v419 = vadd.f32 %v314, %v418
        %v420 = vpop.f32.mrf.mxu0
        %v421 = vpop.f32.mrf.mxu0
        %v422 = vadd.f32 %v314, %v421
        %v423 = vpop.f32.mrf.mxu0
        %424 = vdwg.mxu0
        %v425 = vmax.f32 %v411, 0.0
        %v426 = vmax.f32 %v414, 0.0
        %v427 = vmax.f32 %v419, 0.0
        %v428 = vmax.f32 %v422, 0.0
        %v429 = vpack.c.bf16 %v426, %v425
        %v430 = vpack.c.bf16 %v428, %v427
        %v431 = vld [vmem:[#allocation7] sm:$0xf]
        %v432 = vld [vmem:[#allocation7 + $0x4] sm:$0xf]
        %v433 = vld [vmem:[#allocation7 + $0x8] sm:$0xf]
        %v434 = vld [vmem:[#allocation7 + $0xc] sm:$0xf]
        %v435 = vld [vmem:[#allocation7 + $0x10] sm:$0xf]
        %v436 = vld [vmem:[#allocation7 + $0x14] sm:$0xf]
        %v437 = vld [vmem:[#allocation7 + $0x18] sm:$0xf]
        %v438 = vld [vmem:[#allocation7 + $0x1c] sm:$0xf]
        %v439 = vld [vmem:[#allocation7 + $0x20] sm:$0xf]
        %v440 = vld [vmem:[#allocation7 + $0x24] sm:$0xf]
        %v441 = vld [vmem:[#allocation7 + $0x28] sm:$0xf]
        %v442 = vld [vmem:[#allocation7 + $0x2c] sm:$0xf]
        %v443 = vld [vmem:[#allocation7 + $0x30] sm:$0xf]
        %v444 = vld [vmem:[#allocation7 + $0x34] sm:$0xf]
        %v445 = vld [vmem:[#allocation7 + $0x38] sm:$0xf]
        %v446 = vld [vmem:[#allocation7 + $0x3c] sm:$0xf]
        %v447 = vld [vmem:[%s4] sm:$0x1]
        %v449 = vlaneseq
        %v450 = vshrl.u32 %v449, 7
        %v451 = vsub.s32 0, %v450
        %v452 = vrot.slane %v447, %v451
        %v470 = vunpack.c.l.b16 %v431
        %v471 = vunpack.c.l.b16 %v432
        %v472 = vunpack.c.l.b16 %v433
        %v473 = vunpack.c.l.b16 %v434
        %v474 = vunpack.c.l.b16 %v435
        %v475 = vunpack.c.l.b16 %v436
        %v476 = vunpack.c.l.b16 %v437
        %v477 = vunpack.c.l.b16 %v438
        %v478 = vunpack.c.l.b16 %v439
        %v479 = vunpack.c.l.b16 %v440
        %v480 = vunpack.c.l.b16 %v441
        %v481 = vunpack.c.l.b16 %v442
        %v482 = vunpack.c.l.b16 %v443
        %v483 = vunpack.c.l.b16 %v444
        %v484 = vunpack.c.l.b16 %v445
        %v485 = vunpack.c.l.b16 %v446
        %v486 = vpack.c.b16 %v471, %v470
        %v487 = vpack.c.b16 %v473, %v472
        %v488 = vpack.c.b16 %v475, %v474
        %v489 = vpack.c.b16 %v477, %v476
        %v490 = vpack.c.b16 %v479, %v478
        %v491 = vpack.c.b16 %v481, %v480
        %v492 = vpack.c.b16 %v483, %v482
        %v493 = vpack.c.b16 %v485, %v484
        %502 = vmatprep.subr.bf16.mxu0 0
        %503 = vmatpush1.bf16.msra.mxu0 %v493
        %504 = vmatprep.subr.bf16.mxu0 0
        %505 = vmatpush1.bf16.msra.mxu0 %v492
        %506 = vmatprep.subr.bf16.mxu0 0
        %507 = vmatpush1.bf16.msra.mxu0 %v491
        %508 = vmatprep.subr.bf16.mxu0 0
        %509 = vmatpush1.bf16.msra.mxu0 %v490
        %510 = vmatprep.subr.bf16.mxu0 0
        %511 = vmatpush1.bf16.msra.mxu0 %v489
        %512 = vmatprep.subr.bf16.mxu0 0
        %513 = vmatpush1.bf16.msra.mxu0 %v488
        %514 = vmatprep.subr.bf16.mxu0 0
        %515 = vmatpush1.bf16.msra.mxu0 %v487
        %516 = vmatprep.subr.bf16.mxu0 0
        %517 = vmatpush1.bf16.msra.mxu0 %v486
        %518 = vmatprep.subr.bf16.mxu0 0
        %519 = vmatpush2.bf16.msra.mxu0 0
        %520 = vmatprep.subr.bf16.mxu0 0
        %521 = vmatpush2.bf16.msra.mxu0 0
        %522 = vmatprep.subr.bf16.mxu0 0
        %523 = vmatpush2.bf16.msra.mxu0 0
        %524 = vmatprep.subr.bf16.mxu0 0
        %525 = vmatpush2.bf16.msra.mxu0 0
        %526 = vmatprep.subr.bf16.mxu0 0
        %527 = vmatpush2.bf16.msra.mxu0 0
        %528 = vmatprep.subr.bf16.mxu0 0
        %529 = vmatpush2.bf16.msra.mxu0 0
        %530 = vmatprep.subr.bf16.mxu0 0
        %531 = vmatpush2.bf16.msra.mxu0 0
        %532 = vmatprep.subr.bf16.mxu0 0
        %533 = vmatpush2.bf16.msra.mxu0 0
        %534 = vmatprep.mubr.bf16.mxu0 0
        %535 = vmatmul.mubr.bf16.gmra.mxu0 %v429
        %v536 = vpop.f32.mrf.mxu0
        %v537 = vadd.f32 %v452, %v536
        %v538 = vpop.f32.mrf.mxu0
        %v539 = vpop.f32.mrf.mxu0
        %v540 = vadd.f32 %v452, %v539
        %v541 = vpop.f32.mrf.mxu0
        %542 = vmatprep.mubr.bf16.mxu0 0
        %543 = vmatmul.mubr.bf16.gmra.mxu0 %v430
        %v544 = vpop.f32.mrf.mxu0
        %v545 = vadd.f32 %v452, %v544
        %v546 = vpop.f32.mrf.mxu0
        %v547 = vpop.f32.mrf.mxu0
        %v548 = vadd.f32 %v452, %v547
        %v549 = vpop.f32.mrf.mxu0
        %550 = vdwg.mxu0
        %551 = vst [vmem:[%s277] sm:$0xff] %v537
        %552 = vst [vmem:[%s277 + $0x8] sm:$0xff] %v540
        %553 = vst [vmem:[%s277 + $0x10] sm:$0xff] %v545
        %554 = vst [vmem:[%s277 + $0x18] sm:$0xff] %v548
        %s555 = sand.u32 %s141, 1
        %s556 = scalar_lea.sflag [#allocation4], %s555
        %s557 = sand.u32 %s141, 1
        %s558 = smul.addr %s557, 32
        %s559 = scalar_lea.vmem [#allocation8], %s558
        // Predicated region
        $region53: #{tpu_custom_call.1} parent=39 // pred_check
          %p560 = pneg %p151
        $region54: #{tpu_custom_call.1} parent=39 // pred_check_branch
          %562 = sbr.rel (%p560) target = $region56
        $region55: #{tpu_custom_call.1} parent=39 // pred_region
          %s563 = smul.u32 4, %s23
          %s564 = ssub.s32 9, %s563
          %p565 = scmp.lt.s32.totalorder %s564, 4
          %s566 = scalar_select %p565, %s564, 4
          %s567 = smul.u32 128, %s566
          %s569 = ssub.s32 512, %s567
          %570 = vsyncadd %s556, %s569
          %p571 = scmp.ne.s32.totalorder 0, %s567
          %s572 = smul.addr %s563, 128
          %s573 = scalar_lea.hbm %s5, %s572
          %s574 = smul.u32 8, %s566
          %s575 = sshll.u32 %s559, 4
          %s576 = int_to_ptr.vmem [resolvable:$true] %s575
          %s577 = sshll.u32 %s574, 4
          %581 = dma.vmem_to_hbm [thread:$0]  (%p571), %s576, %s577, %s573, %s556, 128, 128, 8
        $region56: #{tpu_custom_call.1} parent=39 // pred_fallthru
          _
      $region40: #{tpu_custom_call.1} parent=5 // pred_fallthru
        _
      %p582 = scmp.le.s32.totalorder 2, %s18
      // Predicated region
      $region57: #{tpu_custom_call.1} parent=5 // pred_check
        %p583 = pneg %p582
      $region58: #{tpu_custom_call.1} parent=5 // pred_check_branch
        %585 = sbr.rel (%p583) target = $region60
      $region59: #{tpu_custom_call.1} parent=5 // pred_region
        %s586 = ssub.s32 %s18, 2
        // Predicated region
        $region61: #{tpu_custom_call.1} parent=59 // pred_check
          %p587 = pneg %p157
        $region62: #{tpu_custom_call.1} parent=59 // pred_check_branch
          %589 = sbr.rel (%p587) target = $region64
        $region63: #{tpu_custom_call.1} parent=59 // pred_region
          %s590 = sand.u32 %s142, 1
          %s591 = scalar_lea.sflag [#allocation4], %s590
          %s592 = sand.u32 %s142, 1
          %s593 = smul.addr %s592, 32
          %s594 = scalar_lea.vmem [#allocation8], %s593
          %595 = dma.done %s591, 512
        $region64: #{tpu_custom_call.1} parent=59 // pred_fallthru
          _
      $region60: #{tpu_custom_call.1} parent=5 // pred_fallthru
        _
    $region6: #{tpu_custom_call.1} parent=1 // loop_footer
      %s22 = sadd.s32 1, %s18
    $region7: #{tpu_custom_call.1} parent=1 // loop_footer_branch
      %17 = sbr.rel target = $region3
    $region8: #{tpu_custom_call.1} parent=1 // loop_exit
      _
    %596 = vsyncpa [#allocation3], 1
    %s597 = scalar_lea.sflag [#allocation3], 1
    %598 = vsyncpa %s597, 1
    %599 = vsyncpa [#allocation6], 1
    %600 = vsyncpa [#allocation4], 1
    %s601 = scalar_lea.sflag [#allocation4], 1
    %602 = vsyncpa %s601, 1

</llo_original>
